<compile_context>
chip_gen: v6e
topology: v6e:2x2x1
jax: 0.10.0
libtpu: 0.0.40
codegen_flags: <defaults>
</compile_context>

<pallas_src>
import functools

import jax
import jax.numpy as jnp
from jax import lax
from jax.experimental import pallas as pl
from jax.experimental.pallas import tpu as pltpu


def _round_up(x, m):
    return (x + m - 1) // m * m


# ------------------------------ kernels -------------------------------------


def _fused_kernel(x_ref, emb_ref, o_ref):
    """Single-pass fused ConditionalInstanceNorm2d+ for nb whole samples.

    x_ref:   (nb, C, HW)
    emb_ref: (nb, C, 3)  per-channel (gamma, alpha, beta) triplets, f32
    o_ref:   (nb, C, HW)
    """
    x = x_ref[...].astype(jnp.float32)                      # (nb, C, HW)
    _, c, _ = x.shape

    # Per-channel mean / variance (two-pass form: x is resident, no E[x^2]-mu^2
    # cancellation).
    mu = jnp.mean(x, axis=-1, keepdims=True)                # (nb, C, 1)
    d = x - mu
    var = jnp.mean(d * d, axis=-1, keepdims=True)           # biased (InstanceNorm)
    inv_std = lax.rsqrt(var + 1e-5)

    # Cross-channel stats of the per-channel means (unbiased variance, /(C-1)).
    m = jnp.mean(mu, axis=1, keepdims=True)                 # (nb, 1, 1)
    v = jnp.sum((mu - m) ** 2, axis=1, keepdims=True) * (1.0 / (c - 1))
    means_n = (mu - m) * lax.rsqrt(v + 1e-5)                # (nb, C, 1)

    emb = emb_ref[...]                                      # (nb, C, 3) f32
    gamma = emb[:, :, 0:1]
    alpha = emb[:, :, 1:2]
    beta = emb[:, :, 2:3]

    # out = gamma*inv_std*(x-mu) + gamma*alpha*means_n + beta = a*d + b.
    a = gamma * inv_std
    b = beta + gamma * alpha * means_n
    o_ref[...] = (a * d + b).astype(o_ref.dtype)


def _make_tiled_kernel(hw_total, thw, k_tiles):
    """Phase-gated single-call fallback for samples that do not fit in VMEM.

    Grid axis 1 runs 2*k_tiles steps: k <  k_tiles  -> accumulate shifted
    per-channel sums; k == k_tiles -> fold everything into (a, b); k >= k_tiles
    -> stream out = a*x + b.
    """
    inv_hw = 1.0 / hw_total
    needs_mask = (hw_total % thw) != 0
    n0 = min(thw, hw_total)  # valid lanes in tile 0 (for the pivot)

    def kernel(x_ref, emb_ref, o_ref, pivot_sc, s1_sc, s2_sc, a_sc, b_sc):
        k = pl.program_id(1)

        # ---------------- phase 1: shifted per-channel sums ----------------
        @pl.when(k < k_tiles)
        def _stats():
            x = x_ref[0].astype(jnp.float32)                # (C, thw)
            valid = None
            if needs_mask:
                lane = lax.broadcasted_iota(jnp.int32, x.shape, 1) + k * thw
                valid = lane < hw_total

            @pl.when(k == 0)
            def _init():
                x0 = x if valid is None else jnp.where(valid, x, 0.0)
                pivot_sc[...] = jnp.sum(x0, axis=-1, keepdims=True) * (1.0 / n0)
                s1_sc[...] = jnp.zeros_like(s1_sc)
                s2_sc[...] = jnp.zeros_like(s2_sc)

            d = x - pivot_sc[...]
            if valid is not None:
                d = jnp.where(valid, d, 0.0)                # re-mask after shift
            s1_sc[...] += jnp.sum(d, axis=-1, keepdims=True)
            s2_sc[...] += jnp.sum(d * d, axis=-1, keepdims=True)

        # -------- phase boundary: tiny per-channel math, done in-kernel --------
        @pl.when(k == k_tiles)
        def _finalize():
            c = s1_sc.shape[0]
            mu_d = s1_sc[...] * inv_hw                      # mean of (x - pivot)
            var = jnp.maximum(s2_sc[...] * inv_hw - mu_d * mu_d, 0.0)
            inv_std = lax.rsqrt(var + 1e-5)
            mu = pivot_sc[...] + mu_d                       # (C, 1)
            m = jnp.mean(mu, axis=0, keepdims=True)         # (1, 1)
            v = jnp.sum((mu - m) ** 2, axis=0, keepdims=True) * (1.0 / (c - 1))
            means_n = (mu - m) * lax.rsqrt(v + 1e-5)
            emb = emb_ref[0]                                # (C, 3)
            gamma = emb[:, 0:1]
            alpha = emb[:, 1:2]
            beta = emb[:, 2:3]
            a_sc[...] = gamma * inv_std
            b_sc[...] = beta + gamma * (alpha * means_n - mu * inv_std)

        # ---------------- phase 2: stream out = a*x + b ----------------
        @pl.when(k >= k_tiles)
        def _apply():
            o_ref[0] = (a_sc[...] * x_ref[0].astype(jnp.float32)
                        + b_sc[...]).astype(o_ref.dtype)

    return kernel


# ------------------------------ sizing ---------------------------------------


def _vmem_budget():
    """Generation-aware (block_cap_bytes, vmem_limit_cap_bytes)."""
    try:
        cap = int(pltpu.get_tpu_info().vmem_capacity_bytes)
    except Exception:  # pragma: no cover - conservative fallback
        cap = 64 << 20
    if cap >= (96 << 20):          # v5e / v6e: 128 MiB physical VMEM
        limit_cap = 100 << 20
    else:                           # v7x: 64 MiB physical; keep >=12 MiB headroom
        limit_cap = 52 << 20
    # High-water mark bounded by ~9 block-sized f32 buffers (<=3 input bufs +
    # 2 output bufs + elementwise temporaries), so derive the block cap from it.
    max_block = (limit_cap - (4 << 20)) // 9
    return max_block, limit_cap


def _vmem_limit(block_f32_bytes, extra_bytes, limit_cap):
    est = 9 * block_f32_bytes + extra_bytes + (2 << 20)
    return int(min(max(est, 32 << 20), limit_cap))


def _buffered_spec(block_shape, index_map, bufs):
    """BlockSpec with pipeline_mode=Buffered(bufs) if supported, else plain."""
    try:
        return pl.BlockSpec(block_shape, index_map,
                            pipeline_mode=pl.Buffered(bufs))
    except Exception:  # pragma: no cover - older API without pipeline_mode
        return pl.BlockSpec(block_shape, index_map)


# ------------------------------ wrapper --------------------------------------


@functools.partial(jax.jit, static_argnames=("bias", "max_block_bytes"))
def conditional_instance_norm_2d_plus(x, y, embed_weight, *, bias=True,
                                      max_block_bytes=None):
    """x: (N, C, H, W), y: (N,) int32 class ids,
    embed_weight: (num_classes, 3*C) if bias else (num_classes, 2*C)."""
    N, C, H, W = x.shape
    HW = H * W

    max_block_auto, limit_cap = _vmem_budget()
    if max_block_bytes is None:
        max_block_bytes = max_block_auto

    # Embedding gather stays in XLA (tiny).  Present it per-channel as (N, C, 3)
    # triplets: the channel axis sits on sublanes and the lane dim pads to 128
    # only once.
    emb = embed_weight[y]                                   # (N, 3C) or (N, 2C)
    if bias:
        emb = emb.reshape(N, 3, C)
    else:
        emb = jnp.concatenate(
            [emb.reshape(N, 2, C), jnp.zeros((N, 1, C), emb.dtype)], axis=1)
    emb = jnp.transpose(emb, (0, 2, 1)).astype(jnp.float32)  # (N, C, 3)

    x_flat = x.reshape(N, C, HW)
    padded_C = _round_up(C, 8)
    padded_HW = _round_up(HW, 128)
    sample_vmem_f32 = padded_C * padded_HW * 4              # padded VMEM footprint

    if sample_vmem_f32 <= max_block_bytes:
        # ---------- single fused pass, several samples per grid step ----------
        nb_budget = max(1, max_block_bytes // sample_vmem_f32)
        # Keep >= min(N, 4) grid steps: pipelining overlap + both v7x cores busy.
        min_steps = min(N, 4)
        nb = max(1, min(nb_budget, pl.cdiv(N, min_steps)))
        grid0 = pl.cdiv(N, nb)      # edge block: OOB rows clipped on store
        block_f32 = nb * sample_vmem_f32
        emb_pad = nb * padded_C * 128 * 4                   # padded VMEM estimate

        out_flat = pl.pallas_call(
            _fused_kernel,
            out_shape=jax.ShapeDtypeStruct((N, C, HW), x.dtype),
            grid_spec=pltpu.PrefetchScalarGridSpec(
                num_scalar_prefetch=0,
                grid=(grid0,),
                in_specs=[
                    pl.BlockSpec((nb, C, HW), lambda i: (i, 0, 0)),
                    pl.BlockSpec((nb, C, 3), lambda i: (i, 0, 0)),
                ],
                out_specs=pl.BlockSpec((nb, C, HW), lambda i: (i, 0, 0)),
            ),
            compiler_params=pltpu.CompilerParams(
                dimension_semantics=("parallel",),
                vmem_limit_bytes=_vmem_limit(block_f32, 4 * emb_pad, limit_cap),
            ),
        )(x_flat, emb)
        return out_flat.reshape(N, C, H, W)

    # ---------- large samples: single phase-gated HW-tiled pass ----------
    # TODO(synk): channels so large that padded_C*128*4 exceeds the block budget
    # would additionally need channel tiling (not implemented).
    thw = max(128, (max_block_bytes // (padded_C * 4)) // 128 * 128)
    thw = min(thw, padded_HW)
    k_tiles = pl.cdiv(HW, thw)
    block_f32 = padded_C * thw * 4

    x_in_spec = _buffered_spec(
        (1, C, thw), lambda b, k: (b, 0, k % k_tiles), bufs=3)

    out_flat = pl.pallas_call(
        _make_tiled_kernel(HW, thw, k_tiles),
        out_shape=jax.ShapeDtypeStruct((N, C, HW), x.dtype),
        grid_spec=pltpu.PrefetchScalarGridSpec(
            num_scalar_prefetch=0,
            grid=(N, 2 * k_tiles),
            in_specs=[
                x_in_spec,
                pl.BlockSpec((1, C, 3), lambda b, k: (b, 0, 0)),
            ],
            out_specs=pl.BlockSpec(
                (1, C, thw), lambda b, k: (b, 0, jnp.maximum(k - k_tiles, 0))),
            scratch_shapes=[pltpu.VMEM((C, 1), jnp.float32)] * 5,
        ),
        compiler_params=pltpu.CompilerParams(
            dimension_semantics=("parallel", "arbitrary"),
            vmem_limit_bytes=_vmem_limit(block_f32, 1 << 20, limit_cap),
        ),
    )(x_flat, emb)
    return out_flat.reshape(N, C, H, W)


# ------------------------------ reference ------------------------------------


def _reference(x, y, embed_weight, bias=True):
    """Pure-JAX reference mirroring the PyTorch module."""
    means = jnp.mean(x, axis=(2, 3))                        # (N, C)
    m = jnp.mean(means, axis=-1, keepdims=True)
    v = jnp.var(means, axis=-1, keepdims=True, ddof=1)      # unbiased
    means = (means - m) / jnp.sqrt(v + 1e-5)
    mu = jnp.mean(x, axis=(2, 3), keepdims=True)
    var = jnp.var(x, axis=(2, 3), keepdims=True)            # biased
    h = (x - mu) / jnp.sqrt(var + 1e-5)
    emb = embed_weight[y]
    if bias:
        gamma, alpha, beta = jnp.split(emb, 3, axis=-1)
    else:
        gamma, alpha = jnp.split(emb, 2, axis=-1)
        beta = jnp.zeros_like(gamma)
    h = h + means[..., None, None] * alpha[..., None, None]
    return gamma[..., None, None] * h + beta[..., None, None]


# ------------------------------ main ------------------------------------------


if __name__ == "__main__":
    key = jax.random.PRNGKey(0)
    num_classes = 10
    ks = jax.random.split(key, 12)

    # Case 1: small shapes -> fused single-pass path (grid >= 2 steps).
    N, C, H, W = 2, 4, 16, 16
    x = jax.random.normal(ks[0], (N, C, H, W), dtype=jnp.float32)
    y = jax.random.randint(ks[1], (N,), 0, num_classes, dtype=jnp.int32)
    embed_weight = jnp.concatenate(
        [1.0 + 0.02 * jax.random.normal(ks[2], (num_classes, 2 * C), jnp.float32),
         jnp.zeros((num_classes, C), jnp.float32)], axis=-1)
    out = jax.block_until_ready(
        conditional_instance_norm_2d_plus(x, y, embed_weight, bias=True))
    ref = _reference(x, y, embed_weight, bias=True)
    assert out.shape == (N, C, H, W)
    assert jnp.allclose(out, ref, atol=1e-4, rtol=1e-4), "fused path mismatch"

    # Case 2: bias=False variant (same fused path).
    embed_weight_nb = 1.0 + 0.02 * jax.random.normal(
        ks[3], (num_classes, 2 * C), jnp.float32)
    out_nb = jax.block_until_ready(
        conditional_instance_norm_2d_plus(x, y, embed_weight_nb, bias=False))
    ref_nb = _reference(x, y, embed_weight_nb, bias=False)
    assert jnp.allclose(out_nb, ref_nb, atol=1e-4, rtol=1e-4), "bias=False mismatch"

    # Case 3: force the phase-gated HW-tiled path with a masked partial spatial
    # tile (400 % 128 != 0).
    N2, C2, H2, W2 = 2, 8, 20, 20
    x2 = jax.random.normal(ks[4], (N2, C2, H2, W2), dtype=jnp.float32)
    y2 = jax.random.randint(ks[5], (N2,), 0, num_classes, dtype=jnp.int32)
    embed_weight2 = jnp.concatenate(
        [1.0 + 0.02 * jax.random.normal(ks[6], (num_classes, 2 * C2), jnp.float32),
         jnp.zeros((num_classes, C2), jnp.float32)], axis=-1)
    out2 = jax.block_until_ready(
        conditional_instance_norm_2d_plus(
            x2, y2, embed_weight2, bias=True, max_block_bytes=4096))
    ref2 = _reference(x2, y2, embed_weight2, bias=True)
    assert out2.shape == (N2, C2, H2, W2)
    assert jnp.allclose(out2, ref2, atol=1e-4, rtol=1e-4), "tiled path mismatch"

    # Case 4: awkward batch (N=7) -> fused path with a cdiv grid + edge block.
    N3, C3, H3, W3 = 7, 4, 8, 8
    x3 = jax.random.normal(ks[7], (N3, C3, H3, W3), dtype=jnp.float32)
    y3 = jax.random.randint(ks[8], (N3,), 0, num_classes, dtype=jnp.int32)
    embed_weight3 = jnp.concatenate(
        [1.0 + 0.02 * jax.random.normal(ks[9], (num_classes, 2 * C3), jnp.float32),
         jnp.zeros((num_classes, C3), jnp.float32)], axis=-1)
    out3 = jax.block_until_ready(
        conditional_instance_norm_2d_plus(x3, y3, embed_weight3, bias=True))
    ref3 = _reference(x3, y3, embed_weight3, bias=True)
    assert jnp.allclose(out3, ref3, atol=1e-4, rtol=1e-4), "edge-block mismatch"

    # Case 5: tiled path without a masked tail (HW = 256 divisible by 128).
    N4, C4, H4, W4 = 2, 8, 16, 16
    x4 = jax.random.normal(ks[10], (N4, C4, H4, W4), dtype=jnp.float32)
    y4 = jax.random.randint(ks[11], (N4,), 0, num_classes, dtype=jnp.int32)
    out4 = jax.block_until_ready(
        conditional_instance_norm_2d_plus(
            x4, y4, embed_weight2, bias=True, max_block_bytes=4096))
    ref4 = _reference(x4, y4, embed_weight2, bias=True)
    assert jnp.allclose(out4, ref4, atol=1e-4, rtol=1e-4), "tiled no-mask mismatch"

    print("KERNEL_OK")
</pallas_src>

<mosaic_0001>
module attributes {stable_mosaic.version = 11 : i64} {
  func.func @_fused_kernel(%arg0: i32, %arg1: memref<1x4x256xf32, #tpu.memory_space<vmem>>, %arg2: memref<1x4x3xf32, #tpu.memory_space<vmem>>, %arg3: memref<1x4x256xf32, #tpu.memory_space<vmem>>) attributes {dimension_semantics = [#tpu.dimension_semantics<parallel>], iteration_bounds = array<i64: 2>, scalar_prefetch = 0 : i64, scratch_operands = 0 : i64, tpu.core_type = #tpu.core_type<tc>, window_params = [{transform_indices = @transform_0, window_bounds = array<i64: 1, 4, 256>}, {transform_indices = @transform_1, window_bounds = array<i64: 1, 4, 3>}, {transform_indices = @transform_2, window_bounds = array<i64: 1, 4, 256>}]} {
    %c0 = arith.constant 0 : index
    %c0_0 = arith.constant 0 : index
    %c0_1 = arith.constant 0 : index
    %0 = vector.load %arg1[%c0, %c0_0, %c0_1] : memref<1x4x256xf32, #tpu.memory_space<vmem>>, vector<1x4x256xf32>
    %cst = arith.constant dense<0.000000e+00> : vector<1x4xf32>
    %1 = vector.multi_reduction <add>, %0, %cst [2] : vector<1x4x256xf32> to vector<1x4xf32>
    %2 = vector.shape_cast %1 : vector<1x4xf32> to vector<1x4x1xf32>
    %cst_2 = arith.constant 2.560000e+02 : f32
    %3 = vector.broadcast %cst_2 : f32 to vector<1x4x1xf32>
    %4 = arith.divf %2, %3 : vector<1x4x1xf32>
    %5 = vector.broadcast %4 : vector<1x4x1xf32> to vector<1x4x256xf32>
    %6 = arith.subf %0, %5 : vector<1x4x256xf32>
    %7 = arith.mulf %6, %6 : vector<1x4x256xf32>
    %cst_3 = arith.constant dense<0.000000e+00> : vector<1x4xf32>
    %8 = vector.multi_reduction <add>, %7, %cst_3 [2] : vector<1x4x256xf32> to vector<1x4xf32>
    %9 = vector.shape_cast %8 : vector<1x4xf32> to vector<1x4x1xf32>
    %cst_4 = arith.constant 2.560000e+02 : f32
    %10 = vector.broadcast %cst_4 : f32 to vector<1x4x1xf32>
    %11 = arith.divf %9, %10 : vector<1x4x1xf32>
    %cst_5 = arith.constant 9.99999974E-6 : f32
    %12 = vector.broadcast %cst_5 : f32 to vector<1x4x1xf32>
    %13 = arith.addf %11, %12 : vector<1x4x1xf32>
    %14 = math.rsqrt %13 : vector<1x4x1xf32>
    %cst_6 = arith.constant dense<0.000000e+00> : vector<1x1xf32>
    %15 = vector.multi_reduction <add>, %4, %cst_6 [1] : vector<1x4x1xf32> to vector<1x1xf32>
    %16 = vector.shape_cast %15 : vector<1x1xf32> to vector<1x1x1xf32>
    %cst_7 = arith.constant 4.000000e+00 : f32
    %17 = vector.broadcast %cst_7 : f32 to vector<1x1x1xf32>
    %18 = arith.divf %16, %17 : vector<1x1x1xf32>
    %19 = vector.broadcast %18 : vector<1x1x1xf32> to vector<1x4x1xf32>
    %20 = arith.subf %4, %19 : vector<1x4x1xf32>
    %21 = arith.mulf %20, %20 : vector<1x4x1xf32>
    %cst_8 = arith.constant dense<0.000000e+00> : vector<1x1xf32>
    %22 = vector.multi_reduction <add>, %21, %cst_8 [1] : vector<1x4x1xf32> to vector<1x1xf32>
    %23 = vector.shape_cast %22 : vector<1x1xf32> to vector<1x1x1xf32>
    %cst_9 = arith.constant 0.333333343 : f32
    %24 = vector.broadcast %cst_9 : f32 to vector<1x1x1xf32>
    %25 = arith.mulf %23, %24 : vector<1x1x1xf32>
    %26 = vector.broadcast %18 : vector<1x1x1xf32> to vector<1x4x1xf32>
    %27 = arith.subf %4, %26 : vector<1x4x1xf32>
    %cst_10 = arith.constant 9.99999974E-6 : f32
    %28 = vector.broadcast %cst_10 : f32 to vector<1x1x1xf32>
    %29 = arith.addf %25, %28 : vector<1x1x1xf32>
    %30 = math.rsqrt %29 : vector<1x1x1xf32>
    %31 = vector.broadcast %30 : vector<1x1x1xf32> to vector<1x4x1xf32>
    %32 = arith.mulf %27, %31 : vector<1x4x1xf32>
    %c0_11 = arith.constant 0 : index
    %c0_12 = arith.constant 0 : index
    %c0_13 = arith.constant 0 : index
    %33 = vector.load %arg2[%c0_11, %c0_12, %c0_13] : memref<1x4x3xf32, #tpu.memory_space<vmem>>, vector<1x4x3xf32>
    %34 = vector.extract_strided_slice %33 {offsets = [0, 0, 0], sizes = [1, 4, 1], strides = [1, 1, 1]} : vector<1x4x3xf32> to vector<1x4x1xf32>
    %35 = vector.extract_strided_slice %33 {offsets = [0, 0, 1], sizes = [1, 4, 1], strides = [1, 1, 1]} : vector<1x4x3xf32> to vector<1x4x1xf32>
    %36 = vector.extract_strided_slice %33 {offsets = [0, 0, 2], sizes = [1, 4, 1], strides = [1, 1, 1]} : vector<1x4x3xf32> to vector<1x4x1xf32>
    %37 = arith.mulf %34, %14 : vector<1x4x1xf32>
    %38 = arith.mulf %34, %35 : vector<1x4x1xf32>
    %39 = arith.mulf %38, %32 : vector<1x4x1xf32>
    %40 = arith.addf %36, %39 : vector<1x4x1xf32>
    %41 = vector.broadcast %37 : vector<1x4x1xf32> to vector<1x4x256xf32>
    %42 = arith.mulf %41, %6 : vector<1x4x256xf32>
    %43 = vector.broadcast %40 : vector<1x4x1xf32> to vector<1x4x256xf32>
    %44 = arith.addf %42, %43 : vector<1x4x256xf32>
    %c0_14 = arith.constant 0 : index
    %c0_15 = arith.constant 0 : index
    %c0_16 = arith.constant 0 : index
    %45 = vector.load %arg3[%c0_14, %c0_15, %c0_16] : memref<1x4x256xf32, #tpu.memory_space<vmem>>, vector<1x4x256xf32>
    tpu.vector_store %arg3[%c0_14, %c0_15, %c0_16], %44 {strides = array<i32>} : memref<1x4x256xf32, #tpu.memory_space<vmem>>, vector<1x4x256xf32>,
    return
  }
  func.func @transform_0(%arg0: i32) -> (i32, i32, i32) {
    %c0_i32 = arith.constant 0 : i32
    %c0_i32_0 = arith.constant 0 : i32
    %c0_i32_1 = arith.constant 0 : i32
    return %arg0, %c0_i32, %c0_i32_0 : i32, i32, i32
  }
  func.func @transform_1(%arg0: i32) -> (i32, i32, i32) {
    %c0_i32 = arith.constant 0 : i32
    %c0_i32_0 = arith.constant 0 : i32
    %c0_i32_1 = arith.constant 0 : i32
    return %arg0, %c0_i32, %c0_i32_0 : i32, i32, i32
  }
  func.func @transform_2(%arg0: i32) -> (i32, i32, i32) {
    %c0_i32 = arith.constant 0 : i32
    %c0_i32_0 = arith.constant 0 : i32
    %c0_i32_1 = arith.constant 0 : i32
    return %arg0, %c0_i32, %c0_i32_0 : i32, i32, i32
  }
}

</mosaic_0001>

<llo_original>
// kernel: conditional_instance_norm_2d_plus.1
$region0: #{conditional_instance_norm_2d_plus.1}
  #allocation0 [shape = 'u32[]', space=smem, size = 0x4, offset = 0x4, fixed_abs, tag = 'smem constant byte address 0x4 - core index']
  #allocation1 [shape = 'u32[144,128]{1,0:T(1,128)}', space=vmem, size = 0x12000, scoped, tag = 'internal scratch']
  %s0 = inlined_call_operand.vmem [shape: f32[2,4,256], index: 0, kind: input, shape index: {}]
  %s1 = inlined_call_operand.vmem [shape: f32[2,4,3], index: 1, kind: input, shape index: {}]
  %s2 = inlined_call_operand.vmem [shape: f32[2,4,256], index: 2, kind: output, shape index: {}]
  %s3 = sld [smem:[#allocation0]]
  $region41: #{conditional_instance_norm_2d_plus.1} parent=0
    _
  %s5 = ssub.s32 1, %s3
  %s6 = scalar_select 0, %s5, %s3
  loop: start=0, step=1, limit=4
  $region2: #{conditional_instance_norm_2d_plus.1} parent=0 // loop_pre_header
    _
  $region3: #{conditional_instance_norm_2d_plus.1} parent=0 // loop_header
    %s8 = sphi 0, %s12
    %p9 = scmp.ge.s32.totalorder %s8, 4
    %s18 = sphi 0, %s20
    %s21 = sphi 0, %s18
    %s22 = sphi 0, %s21
    %s38 = sphi 0, %s22
    %s44 = sphi 0, %s46
    %s47 = sphi 0, %s44
    %s48 = sphi 0, %s47
    %s64 = sphi 0, %s48
    %s70 = sphi 0, %s72
    %s73 = sphi 0, %s70
    %s74 = sphi 0, %s73
    %s90 = sphi 0, %s74
  $region4: #{conditional_instance_norm_2d_plus.1} parent=0 // loop_header_branch
    %11 = sbr.rel (%p9) target = $region8
  $region5: #{conditional_instance_norm_2d_plus.1} parent=0 // loop_body
    %s13 = ssub.s32 %s8, 1
    %s14 = ssub.s32 %s8, 2
    %s15 = sadd.s32 %s8, 1
    %s16 = ssub.s32 %s8, %s15
    %p17 = scmp.eq.s32.totalorder %s16, 0
    %s19 = sadd.s32 %s18, 1
    %s20 = scalar_select %p17, %s18, %s19
    %p23 = pneg %p17
    %p24 = scmp.eq.s32.totalorder %s8, 1
    %p25 = por %p23, %p24
    %p26 = scmp.ne.s32.totalorder %s18, %s21
    %p27 = scmp.eq.s32.totalorder %s8, 0
    %p28 = por %p26, %p27
    %p29 = scmp.ne.s32.totalorder %s18, %s21
    %p30 = scmp.eq.s32.totalorder %s13, 1
    %p31 = por %p29, %p30
    %p32 = scmp.ne.s32.totalorder %s21, %s22
    %p33 = scmp.eq.s32.totalorder %s13, 0
    %p34 = por %p32, %p33
    %p35 = scmp.ne.s32.totalorder %s21, %s22
    %p36 = scmp.eq.s32.totalorder %s14, 1
    %p37 = por %p35, %p36
    %p39 = scmp.ne.s32.totalorder %s22, %s38
    %p40 = scmp.eq.s32.totalorder %s14, 0
    %p41 = por %p39, %p40
    %s42 = ssub.s32 %s8, %s15
    %p43 = scmp.eq.s32.totalorder %s42, 0
    %s45 = sadd.s32 %s44, 1
    %s46 = scalar_select %p43, %s44, %s45
    %p49 = pneg %p43
    %p50 = scmp.eq.s32.totalorder %s8, 1
    %p51 = por %p49, %p50
    %p52 = scmp.ne.s32.totalorder %s44, %s47
    %p53 = scmp.eq.s32.totalorder %s8, 0
    %p54 = por %p52, %p53
    %p55 = scmp.ne.s32.totalorder %s44, %s47
    %p56 = scmp.eq.s32.totalorder %s13, 1
    %p57 = por %p55, %p56
    %p58 = scmp.ne.s32.totalorder %s47, %s48
    %p59 = scmp.eq.s32.totalorder %s13, 0
    %p60 = por %p58, %p59
    %p61 = scmp.ne.s32.totalorder %s47, %s48
    %p62 = scmp.eq.s32.totalorder %s14, 1
    %p63 = por %p61, %p62
    %p65 = scmp.ne.s32.totalorder %s48, %s64
    %p66 = scmp.eq.s32.totalorder %s14, 0
    %p67 = por %p65, %p66
    %s68 = ssub.s32 %s8, %s15
    %p69 = scmp.eq.s32.totalorder %s68, 0
    %s71 = sadd.s32 %s70, 1
    %s72 = scalar_select %p69, %s70, %s71
    %p75 = pneg %p69
    %p76 = scmp.eq.s32.totalorder %s8, 1
    %p77 = por %p75, %p76
    %p78 = scmp.ne.s32.totalorder %s70, %s73
    %p79 = scmp.eq.s32.totalorder %s8, 0
    %p80 = por %p78, %p79
    %p81 = scmp.ne.s32.totalorder %s70, %s73
    %p82 = scmp.eq.s32.totalorder %s13, 1
    %p83 = por %p81, %p82
    %p84 = scmp.ne.s32.totalorder %s73, %s74
    %p85 = scmp.eq.s32.totalorder %s13, 0
    %p86 = por %p84, %p85
    %p87 = scmp.ne.s32.totalorder %s73, %s74
    %p88 = scmp.eq.s32.totalorder %s14, 1
    %p89 = por %p87, %p88
    %p91 = scmp.ne.s32.totalorder %s74, %s90
    %p92 = scmp.eq.s32.totalorder %s14, 0
    %p93 = por %p91, %p92
    %p94 = scmp.le.s32.totalorder 1, %s8
    %p95 = scmp.lt.s32.totalorder %s8, 3
    %p96 = pnand %p94, %p95
    %p97 = pneg %p96
    // Predicated region
    $region9: #{conditional_instance_norm_2d_plus.1} parent=5 // pred_check
      _
    $region10: #{conditional_instance_norm_2d_plus.1} parent=5 // pred_check_branch
      %99 = sbr.rel (%p96) target = $region12
    $region11: #{conditional_instance_norm_2d_plus.1} parent=5 // pred_region
      %s100 = ssub.s32 %s8, 1
    $region12: #{conditional_instance_norm_2d_plus.1} parent=5 // pred_fallthru
      _
    %p101 = scmp.lt.s32.totalorder %s8, 2
    // Predicated region
    $region13: #{conditional_instance_norm_2d_plus.1} parent=5 // pred_check
      %p102 = pneg %p101
    $region14: #{conditional_instance_norm_2d_plus.1} parent=5 // pred_check_branch
      %104 = sbr.rel (%p102) target = $region16
    $region15: #{conditional_instance_norm_2d_plus.1} parent=5 // pred_region
      // Predicated region
      $region17: #{conditional_instance_norm_2d_plus.1} parent=15 // pred_check
        %p105 = pneg %p28
      $region18: #{conditional_instance_norm_2d_plus.1} parent=15 // pred_check_branch
        %107 = sbr.rel (%p105) target = $region20
      $region19: #{conditional_instance_norm_2d_plus.1} parent=15 // pred_region
        %p108 = scmp.lt.s32.totalorder %s8, 1
        %s109 = scalar_select %p108, %s8, 1
        %s110 = smul.addr %s109, 2
        %s111 = smul.addr %s110, 4
        %s112 = scalar_lea.vmem %s0, %s111
      $region20: #{conditional_instance_norm_2d_plus.1} parent=15 // pred_fallthru
        _
      // Predicated region
      $region21: #{conditional_instance_norm_2d_plus.1} parent=15 // pred_check
        %p113 = pneg %p54
      $region22: #{conditional_instance_norm_2d_plus.1} parent=15 // pred_check_branch
        %115 = sbr.rel (%p113) target = $region24
      $region23: #{conditional_instance_norm_2d_plus.1} parent=15 // pred_region
        %p116 = scmp.lt.s32.totalorder %s8, 1
        %s117 = scalar_select %p116, %s8, 1
        %s118 = smul.addr %s117, 4
        %s119 = scalar_lea.vmem %s1, %s118
      $region24: #{conditional_instance_norm_2d_plus.1} parent=15 // pred_fallthru
        _
    $region16: #{conditional_instance_norm_2d_plus.1} parent=5 // pred_fallthru
      _
    %p120 = scmp.le.s32.totalorder 1, %s8
    %p121 = scmp.lt.s32.totalorder %s8, 3
    %p122 = pnand %p120, %p121
    %p123 = pneg %p122
    // Predicated region
    $region25: #{conditional_instance_norm_2d_plus.1} parent=5 // pred_check
      _
    $region26: #{conditional_instance_norm_2d_plus.1} parent=5 // pred_check_branch
      %125 = sbr.rel (%p122) target = $region28
    $region27: #{conditional_instance_norm_2d_plus.1} parent=5 // pred_region
      %s126 = ssub.s32 %s8, 1
      %p127 = scmp.lt.s32.totalorder %s13, 1
      %s128 = scalar_select %p127, %s13, 1
      %s129 = smul.addr %s128, 2
      %s130 = smul.addr %s129, 4
      %s131 = scalar_lea.vmem %s0, %s130
      %p132 = pneg %p34
      %p133 = pneg %p31
      %p134 = scmp.lt.s32.totalorder %s13, 1
      %s135 = scalar_select %p134, %s13, 1
      %s136 = smul.addr %s135, 4
      %s137 = scalar_lea.vmem %s1, %s136
      %p138 = pneg %p60
      %p139 = pneg %p57
      %p140 = pneg %p86
      %p141 = pneg %p83
      %p142 = scmp.lt.s32.totalorder %s13, 1
      %s143 = scalar_select %p142, %s13, 1
      %s144 = smul.addr %s143, 2
      %s145 = smul.addr %s144, 4
      %s146 = scalar_lea.vmem %s2, %s145
      %p147 = scmp.lt.s32.totalorder %s13, 1
      %s148 = scalar_select %p147, %s13, 1
      %s149 = smul.addr %s148, 2
      %s150 = smul.addr %s149, 4
      %s151 = scalar_lea.vmem %s0, %s150
      %p152 = scmp.lt.s32.totalorder %s13, 1
      %s153 = scalar_select %p152, %s13, 1
      %s154 = smul.addr %s153, 4
      %s155 = scalar_lea.vmem %s1, %s154
      %p156 = scmp.lt.s32.totalorder %s13, 1
      %s157 = scalar_select %p156, %s13, 1
      %s158 = smul.addr %s157, 2
      %s159 = smul.addr %s158, 4
      %s160 = scalar_lea.vmem %s2, %s159
      %v161 = vld [vmem:[%s151] sm:$0xff]
      %v163 = vcombine.high %v161, %v161
      %vm165 = vcmask 1043456
      %v166 = vsel %vm165, %v161, 0.0
      %v167 = vsel %vm165, %v163, 0.0
      %v168 = vadd.f32 %v166, %v167
      %169 = vadd.xlane.f32.xlu0 %v168
      %v170 = vpop.xlane.xlu0 %169
      %v171 = vrcp.pop 256.0
      %v172 = vmul.f32 %v170, %v171
      %v175 = vunpack.c.l.s4 839922192
      %v176 = vunpack.c.0.s8 %v175
      %v177 = vlaneseq
      %v178 = vshrl.u32 %v177, 7
      %v179 = vsub.s32 %v176, %v178
      %v180 = vrot.slane %v172, %v179
      %v182 = vsub.f32 %v161, %v180
      %v183 = vmul.f32 %v182, %v182
      %v185 = vcombine.high %v183, %v183
      %v187 = vsel %vm165, %v183, 0.0
      %v188 = vsel %vm165, %v185, 0.0
      %v189 = vadd.f32 %v187, %v188
      %190 = vadd.xlane.f32.xlu0 %v189
      %v191 = vpop.xlane.xlu0 %190
      %v192 = vmul.f32 %v191, %v171
      %v193 = vadd.f32 %v192, 1e-05
      %v194 = vrsqrt.pop %v193
      %v195 = vsel %vm165, %v172, 0.0
      %v196 = vrot.slane %v195, 4
      %v197 = vadd.f32 %v195, %v196
      %v198 = vrot.slane %v197, 2
      %v199 = vadd.f32 %v197, %v198
      %v200 = vrot.slane %v199, 1
      %v201 = vadd.f32 %v199, %v200
      %v202 = vrcp.pop 4.0
      %v203 = vmul.f32 %v201, %v202
      %v204 = vsub.f32 %v172, %v203
      %v205 = vmul.f32 %v204, %v204
      %v206 = vsel %vm165, %v205, 0.0
      %v207 = vrot.slane %v206, 4
      %v208 = vadd.f32 %v206, %v207
      %v209 = vrot.slane %v208, 2
      %v210 = vadd.f32 %v208, %v209
      %v211 = vrot.slane %v210, 1
      %v212 = vadd.f32 %v210, %v211
      %v213 = vmul.f32 %v212, 0.33333334
      %v214 = vadd.f32 %v213, 1e-05
      %v215 = vrsqrt.pop %v214
      %v216 = vmul.f32 %v204, %v215
      %v217 = vld [vmem:[%s155] sm:$0xf]
      %v218 = vmul.f32 %v217, %v194
      %220 = vrot.lane.b32.xlu0 %v217, 127
      %v221 = vpop.permute.xlu0 %220
      %v223 = vmul.f32 %v217, %v221
      %v224 = vmul.f32 %v223, %v216
      %226 = vrot.lane.b32.xlu0 %v224, 2
      %v227 = vpop.permute.xlu0 %226
      %v229 = vadd.f32 %v217, %v227
      %231 = vset.pattern.permute.xlu0 0
      %232 = vperm.xlu0 %231, %v218
      %v233 = vpop.permute.xlu0 %232
      %v236 = vcombine.high %v182, %v182
      %v238 = vmul.f32 %v233, %v182
      %v239 = vmul.f32 %v233, %v236
      %241 = vset.pattern.permute.xlu0 2
      %242 = vperm.xlu0 %241, %v229
      %v243 = vpop.permute.xlu0 %242
      %v245 = vadd.f32 %v238, %v243
      %v246 = vadd.f32 %v239, %v243
      %v249 = vcombine.low %v245, %v246
      %251 = vst [vmem:[%s160] sm:$0xff] %v249
      %p252 = scmp.lt.s32.totalorder %s13, 1
      %s253 = scalar_select %p252, %s13, 1
      %s254 = smul.addr %s253, 2
      %s255 = smul.addr %s254, 4
      %s256 = scalar_lea.vmem %s2, %s255
      // Predicated region
      $region29: #{conditional_instance_norm_2d_plus.1} parent=27 // pred_check
        %p257 = pneg %p83
      $region30: #{conditional_instance_norm_2d_plus.1} parent=27 // pred_check_branch
        %259 = sbr.rel (%p257) target = $region32
      $region31: #{conditional_instance_norm_2d_plus.1} parent=27 // pred_region
        _
      $region32: #{conditional_instance_norm_2d_plus.1} parent=27 // pred_fallthru
        _
    $region28: #{conditional_instance_norm_2d_plus.1} parent=5 // pred_fallthru
      _
    %p260 = scmp.le.s32.totalorder 2, %s8
    // Predicated region
    $region33: #{conditional_instance_norm_2d_plus.1} parent=5 // pred_check
      %p261 = pneg %p260
    $region34: #{conditional_instance_norm_2d_plus.1} parent=5 // pred_check_branch
      %263 = sbr.rel (%p261) target = $region36
    $region35: #{conditional_instance_norm_2d_plus.1} parent=5 // pred_region
      %s264 = ssub.s32 %s8, 2
      // Predicated region
      $region37: #{conditional_instance_norm_2d_plus.1} parent=35 // pred_check
        %p265 = pneg %p89
      $region38: #{conditional_instance_norm_2d_plus.1} parent=35 // pred_check_branch
        %267 = sbr.rel (%p265) target = $region40
      $region39: #{conditional_instance_norm_2d_plus.1} parent=35 // pred_region
        %p268 = scmp.lt.s32.totalorder %s14, 1
        %s269 = scalar_select %p268, %s14, 1
        %s270 = smul.addr %s269, 2
        %s271 = smul.addr %s270, 4
        %s272 = scalar_lea.vmem %s2, %s271
      $region40: #{conditional_instance_norm_2d_plus.1} parent=35 // pred_fallthru
        _
    $region36: #{conditional_instance_norm_2d_plus.1} parent=5 // pred_fallthru
      _
  $region6: #{conditional_instance_norm_2d_plus.1} parent=0 // loop_footer
    %s12 = sadd.s32 1, %s8
  $region7: #{conditional_instance_norm_2d_plus.1} parent=0 // loop_footer_branch
    %7 = sbr.rel target = $region3
  $region8: #{conditional_instance_norm_2d_plus.1} parent=0 // loop_exit
    _

</llo_original>
